<compile_context>
chip_gen: v6e
topology: v6e:2x2x1
jax: 0.10.0
libtpu: 0.0.40
codegen_flags: <defaults>
</compile_context>

<pallas_src>
import jax
import jax.numpy as jnp
from jax.experimental import pallas as pl
from jax.experimental.pallas import tpu as pltpu


# --------------------------------------------------------------------------
# Small-table path: whole table resident in VMEM, single grid step.
# --------------------------------------------------------------------------
def _time_embedding_kernel(t_ref, table_ref, out_ref):
    # t_ref:     [B]           int32  (SMEM) -- scalar timestep indices
    # table_ref: [T, d_model]  float  (VMEM) -- full embedding table
    # out_ref:   [B, d_model]  float  (VMEM)
    B = out_ref.shape[0]
    T = table_ref.shape[0]

    rows = []
    for i in range(B):  # static unroll over the (small) batch
        idx = t_ref[i]                                  # scalar SMEM read
        idx = jnp.minimum(jnp.maximum(idx, 0), T - 1)   # clamp OOB (scalar unit)
        rows.append(table_ref[pl.ds(idx, 1), :])        # [1, d_model] dynamic row load
    # One full store (single unmasked vst per vreg) instead of B masked
    # single-sublane stores; the concat shuffles ride the XLU slot.
    out_ref[...] = jnp.concatenate(rows, axis=0)


def _time_embedding_small(t_i32, table):
    B = t_i32.shape[0]
    _, d_model = table.shape
    return pl.pallas_call(
        _time_embedding_kernel,
        out_shape=jax.ShapeDtypeStruct((B, d_model), table.dtype),
        in_specs=[
            # Indices as scalars in SMEM (no [B,1] VMEM vreg load).
            pl.BlockSpec(memory_space=pltpu.MemorySpace.SMEM),
            # Full table as one VMEM block.
            pl.BlockSpec(memory_space=pltpu.MemorySpace.VMEM),
        ],
        out_specs=pl.BlockSpec(memory_space=pltpu.MemorySpace.VMEM),
    )(t_i32, table)


# --------------------------------------------------------------------------
# Large-table path: scalar-prefetch row gather (only B rows ever DMA'd).
# Used when the table exceeds the full-table-DMA / grid-overhead crossover.
# --------------------------------------------------------------------------
def _time_embedding_row_kernel(t_ref, row_ref, out_ref):
    # row_ref: [1, d_model] -- the row selected by the index_map for this step
    out_ref[...] = row_ref[...]


def _time_embedding_gather(t_i32, table):
    B = t_i32.shape[0]
    T, d_model = table.shape
    # Clamp on host side: the prefetched indices drive the index_map directly.
    t_clamped = jnp.clip(t_i32, 0, T - 1)
    grid_spec = pltpu.PrefetchScalarGridSpec(
        num_scalar_prefetch=1,
        grid=(B,),
        in_specs=[
            pl.BlockSpec((pl.Element(1), d_model),
                         lambda i, t_ref: (t_ref[i], 0)),
        ],
        out_specs=pl.BlockSpec((1, d_model), lambda i, t_ref: (i, 0)),
    )
    return pl.pallas_call(
        _time_embedding_row_kernel,
        out_shape=jax.ShapeDtypeStruct((B, d_model), table.dtype),
        grid_spec=grid_spec,
        compiler_params=pltpu.CompilerParams(
            dimension_semantics=("arbitrary",)),
    )(t_clamped, table)


# --------------------------------------------------------------------------
# Public entry point (matches TimeEmbedding.forward(t) given its table).
# --------------------------------------------------------------------------
def time_embedding(t, table, *, gather_threshold_bytes=2 * 1024 * 1024):
    """t: int [B]; table: float [T, d_model] -> float [B, d_model]."""
    t_i32 = t.astype(jnp.int32)
    T, d_model = table.shape
    table_bytes = T * d_model * jnp.dtype(table.dtype).itemsize
    if table_bytes <= gather_threshold_bytes:
        return _time_embedding_small(t_i32, table)
    # Scale guard: only B rows are fetched once the table is large enough
    # that a full-table DMA would dominate the per-step grid overhead.
    return _time_embedding_gather(t_i32, table)


if __name__ == "__main__":
    # config.diffusion.T = 64, config.diffusion.temb_size = 128 (small, even)
    T = 64
    d_model = 128
    B = 8

    key = jax.random.PRNGKey(0)
    k_tab, k_t = jax.random.split(key)
    # nn.Embedding default init ~ N(0, 1)
    table = jax.random.normal(k_tab, (T, d_model), dtype=jnp.float32)
    t = jax.random.randint(k_t, (B,), 0, T, dtype=jnp.int32)

    out = time_embedding(t, table)
    out = jax.block_until_ready(out)

    ref = jnp.take(table, t, axis=0)
    assert out.shape == (B, d_model)
    assert jnp.allclose(out, ref), "mismatch vs reference gather"
    print("KERNEL_OK")
</pallas_src>

<mosaic_0001>
module attributes {stable_mosaic.version = 11 : i64} {
  func.func @_time_embedding_kernel(%arg0: memref<8xi32, #tpu.memory_space<smem>>, %arg1: memref<64x128xf32, #tpu.memory_space<vmem>>, %arg2: memref<8x128xf32, #tpu.memory_space<vmem>>) attributes {dimension_semantics = [], scalar_prefetch = 0 : i64, scratch_operands = 0 : i64, tpu.core_type = #tpu.core_type<tc>} {
    %c0 = arith.constant 0 : index
    %0 = memref.load %arg0[%c0] : memref<8xi32, #tpu.memory_space<smem>>
    %c0_i32 = arith.constant 0 : i32
    %1 = arith.maxsi %0, %c0_i32 : i32
    %c63_i32 = arith.constant 63 : i32
    %2 = arith.minsi %1, %c63_i32 : i32
    %3 = arith.index_cast %2 : i32 to index
    %c0_0 = arith.constant 0 : index
    %4 = vector.load %arg1[%3, %c0_0] : memref<64x128xf32, #tpu.memory_space<vmem>>, vector<1x128xf32>
    %c1 = arith.constant 1 : index
    %5 = memref.load %arg0[%c1] : memref<8xi32, #tpu.memory_space<smem>>
    %c0_i32_1 = arith.constant 0 : i32
    %6 = arith.maxsi %5, %c0_i32_1 : i32
    %c63_i32_2 = arith.constant 63 : i32
    %7 = arith.minsi %6, %c63_i32_2 : i32
    %8 = arith.index_cast %7 : i32 to index
    %c0_3 = arith.constant 0 : index
    %9 = vector.load %arg1[%8, %c0_3] : memref<64x128xf32, #tpu.memory_space<vmem>>, vector<1x128xf32>
    %c2 = arith.constant 2 : index
    %10 = memref.load %arg0[%c2] : memref<8xi32, #tpu.memory_space<smem>>
    %c0_i32_4 = arith.constant 0 : i32
    %11 = arith.maxsi %10, %c0_i32_4 : i32
    %c63_i32_5 = arith.constant 63 : i32
    %12 = arith.minsi %11, %c63_i32_5 : i32
    %13 = arith.index_cast %12 : i32 to index
    %c0_6 = arith.constant 0 : index
    %14 = vector.load %arg1[%13, %c0_6] : memref<64x128xf32, #tpu.memory_space<vmem>>, vector<1x128xf32>
    %c3 = arith.constant 3 : index
    %15 = memref.load %arg0[%c3] : memref<8xi32, #tpu.memory_space<smem>>
    %c0_i32_7 = arith.constant 0 : i32
    %16 = arith.maxsi %15, %c0_i32_7 : i32
    %c63_i32_8 = arith.constant 63 : i32
    %17 = arith.minsi %16, %c63_i32_8 : i32
    %18 = arith.index_cast %17 : i32 to index
    %c0_9 = arith.constant 0 : index
    %19 = vector.load %arg1[%18, %c0_9] : memref<64x128xf32, #tpu.memory_space<vmem>>, vector<1x128xf32>
    %c4 = arith.constant 4 : index
    %20 = memref.load %arg0[%c4] : memref<8xi32, #tpu.memory_space<smem>>
    %c0_i32_10 = arith.constant 0 : i32
    %21 = arith.maxsi %20, %c0_i32_10 : i32
    %c63_i32_11 = arith.constant 63 : i32
    %22 = arith.minsi %21, %c63_i32_11 : i32
    %23 = arith.index_cast %22 : i32 to index
    %c0_12 = arith.constant 0 : index
    %24 = vector.load %arg1[%23, %c0_12] : memref<64x128xf32, #tpu.memory_space<vmem>>, vector<1x128xf32>
    %c5 = arith.constant 5 : index
    %25 = memref.load %arg0[%c5] : memref<8xi32, #tpu.memory_space<smem>>
    %c0_i32_13 = arith.constant 0 : i32
    %26 = arith.maxsi %25, %c0_i32_13 : i32
    %c63_i32_14 = arith.constant 63 : i32
    %27 = arith.minsi %26, %c63_i32_14 : i32
    %28 = arith.index_cast %27 : i32 to index
    %c0_15 = arith.constant 0 : index
    %29 = vector.load %arg1[%28, %c0_15] : memref<64x128xf32, #tpu.memory_space<vmem>>, vector<1x128xf32>
    %c6 = arith.constant 6 : index
    %30 = memref.load %arg0[%c6] : memref<8xi32, #tpu.memory_space<smem>>
    %c0_i32_16 = arith.constant 0 : i32
    %31 = arith.maxsi %30, %c0_i32_16 : i32
    %c63_i32_17 = arith.constant 63 : i32
    %32 = arith.minsi %31, %c63_i32_17 : i32
    %33 = arith.index_cast %32 : i32 to index
    %c0_18 = arith.constant 0 : index
    %34 = vector.load %arg1[%33, %c0_18] : memref<64x128xf32, #tpu.memory_space<vmem>>, vector<1x128xf32>
    %c7 = arith.constant 7 : index
    %35 = memref.load %arg0[%c7] : memref<8xi32, #tpu.memory_space<smem>>
    %c0_i32_19 = arith.constant 0 : i32
    %36 = arith.maxsi %35, %c0_i32_19 : i32
    %c63_i32_20 = arith.constant 63 : i32
    %37 = arith.minsi %36, %c63_i32_20 : i32
    %38 = arith.index_cast %37 : i32 to index
    %c0_21 = arith.constant 0 : index
    %39 = vector.load %arg1[%38, %c0_21] : memref<64x128xf32, #tpu.memory_space<vmem>>, vector<1x128xf32>
    %40 = tpu.concatenate %4, %9, %14, %19, %24, %29, %34, %39 in 0 : vector<1x128xf32>, vector<1x128xf32>, vector<1x128xf32>, vector<1x128xf32>, vector<1x128xf32>, vector<1x128xf32>, vector<1x128xf32>, vector<1x128xf32> -> vector<8x128xf32>
    %c0_22 = arith.constant 0 : index
    %c0_23 = arith.constant 0 : index
    %41 = vector.load %arg2[%c0_22, %c0_23] : memref<8x128xf32, #tpu.memory_space<vmem>>, vector<8x128xf32>
    tpu.vector_store %arg2[%c0_22, %c0_23], %40 {strides = array<i32>} : memref<8x128xf32, #tpu.memory_space<vmem>>, vector<8x128xf32>,
    return
  }
}

</mosaic_0001>

<llo_original>
// kernel: tpu_custom_call.1
$region0: #{tpu_custom_call.1}
  #allocation0 [shape = 'u32[]', space=smem, size = 0x4, offset = 0x4, fixed_abs, tag = 'smem constant byte address 0x4 - core index']
  #allocation1 [shape = 'u32[144,128]{1,0:T(1,128)}', space=vmem, size = 0x12000, scoped, tag = 'internal scratch']
  %s0 = inlined_call_operand.hbm [shape: s32[8], index: 0, kind: input, shape index: {}]
  %s1 = inlined_call_operand.hbm [shape: f32[64,128], index: 1, kind: input, shape index: {}]
  %s2 = inlined_call_operand.hbm [shape: f32[8,128], index: 2, kind: output, shape index: {}]
  %s3 = sld [smem:[#allocation0]]
  $region26: #{tpu_custom_call.1} parent=0
    _
  %s5 = ssub.s32 1, %s3
  %s6 = scalar_select 0, %s5, %s3
  $region1: #{tpu_custom_call.1} parent=0
    #allocation2 [shape = 'u8[512]{0}', space=smem, size = 0x200, scoped, tag = 'input window, operand 0, single buffered']
    #allocation3 [shape = 's32[1]{0}', space=sflag, size = 0x4, scoped, tag = 'scoped memory for tpu_custom_call.1']
    #allocation4 [shape = 's32[1]{0}', space=sflag, size = 0x4, scoped, tag = 'scoped memory for tpu_custom_call.1']
    #allocation5 [shape = 's32[1]{0}', space=sflag, size = 0x4, scoped, tag = 'scoped memory for tpu_custom_call.1']
    #allocation6 [shape = 'u8[32768]{0}', space=vmem, size = 0x8000, scoped, tag = 'input window, operand 1, single buffered']
    #allocation7 [shape = 'u8[4096]{0}', space=vmem, size = 0x1000, scoped, tag = 'output window, operand 0, single buffered']
    %7 = vsyncpa [#allocation5], 0
    %8 = vsyncpa [#allocation3], 0
    %9 = vsyncpa [#allocation4], 0
    // Predicated region
    $region2: #{tpu_custom_call.1} parent=1 // pred_check
      _
    $region3: #{tpu_custom_call.1} parent=1 // pred_check_branch
      %11 = sbr.rel (0) target = $region5
    $region4: #{tpu_custom_call.1} parent=1 // pred_region
      %s13 = ssub.s32 16, 16
      %14 = vsyncadd [#allocation5], %s13
      %17 = dma.hbm_to_smem %s0, 16, [#allocation2], [#allocation5]
    $region5: #{tpu_custom_call.1} parent=1 // pred_fallthru
      _
    // Predicated region
    $region6: #{tpu_custom_call.1} parent=1 // pred_check
      _
    $region7: #{tpu_custom_call.1} parent=1 // pred_check_branch
      %19 = sbr.rel (0) target = $region9
    $region8: #{tpu_custom_call.1} parent=1 // pred_region
      %s21 = ssub.s32 1024, 1024
      %22 = vsyncadd [#allocation3], %s21
      %s23 = sshll.u32 [#allocation6], 4
      %s24 = int_to_ptr.vmem [resolvable:$true] %s23
      %29 = dma.hbm_to_vmem [thread:$0]  %s1, 1024, %s24, [#allocation3], 128, 128, 8
    $region9: #{tpu_custom_call.1} parent=1 // pred_fallthru
      _
    // Predicated region
    $region10: #{tpu_custom_call.1} parent=1 // pred_check
      _
    $region11: #{tpu_custom_call.1} parent=1 // pred_check_branch
      %31 = sbr.rel (0) target = $region13
    $region12: #{tpu_custom_call.1} parent=1 // pred_region
      %32 = dma.done [#allocation5], 16
    $region13: #{tpu_custom_call.1} parent=1 // pred_fallthru
      _
    // Predicated region
    $region14: #{tpu_custom_call.1} parent=1 // pred_check
      _
    $region15: #{tpu_custom_call.1} parent=1 // pred_check_branch
      %34 = sbr.rel (0) target = $region17
    $region16: #{tpu_custom_call.1} parent=1 // pred_region
      %35 = dma.done [#allocation3], 1024
    $region17: #{tpu_custom_call.1} parent=1 // pred_fallthru
      _
    %36 = sfence
    %s37 = sld [smem:[#allocation2]]
    %p38 = scmp.gt.s32.totalorder %s37, 0
    %s39 = scalar_select %p38, %s37, 0
    %p40 = scmp.lt.s32.totalorder %s39, 63
    %s41 = scalar_select %p40, %s39, 63
    %s42 = scalar_lea.vmem [#allocation6], %s41
    %v43 = vld [vmem:[%s42] sm:$0x1]
    %s44 = sld [smem:[#allocation2 + $0x1]]
    %p45 = scmp.gt.s32.totalorder %s44, 0
    %s46 = scalar_select %p45, %s44, 0
    %p47 = scmp.lt.s32.totalorder %s46, 63
    %s48 = scalar_select %p47, %s46, 63
    %s49 = scalar_lea.vmem [#allocation6], %s48
    %v50 = vld [vmem:[%s49] sm:$0x1]
    %s51 = sld [smem:[#allocation2 + $0x2]]
    %p52 = scmp.gt.s32.totalorder %s51, 0
    %s53 = scalar_select %p52, %s51, 0
    %p54 = scmp.lt.s32.totalorder %s53, 63
    %s55 = scalar_select %p54, %s53, 63
    %s56 = scalar_lea.vmem [#allocation6], %s55
    %v57 = vld [vmem:[%s56] sm:$0x1]
    %s58 = sld [smem:[#allocation2 + $0x3]]
    %p59 = scmp.gt.s32.totalorder %s58, 0
    %s60 = scalar_select %p59, %s58, 0
    %p61 = scmp.lt.s32.totalorder %s60, 63
    %s62 = scalar_select %p61, %s60, 63
    %s63 = scalar_lea.vmem [#allocation6], %s62
    %v64 = vld [vmem:[%s63] sm:$0x1]
    %s65 = sld [smem:[#allocation2 + $0x4]]
    %p66 = scmp.gt.s32.totalorder %s65, 0
    %s67 = scalar_select %p66, %s65, 0
    %p68 = scmp.lt.s32.totalorder %s67, 63
    %s69 = scalar_select %p68, %s67, 63
    %s70 = scalar_lea.vmem [#allocation6], %s69
    %v71 = vld [vmem:[%s70] sm:$0x1]
    %s72 = sld [smem:[#allocation2 + $0x5]]
    %p73 = scmp.gt.s32.totalorder %s72, 0
    %s74 = scalar_select %p73, %s72, 0
    %p75 = scmp.lt.s32.totalorder %s74, 63
    %s76 = scalar_select %p75, %s74, 63
    %s77 = scalar_lea.vmem [#allocation6], %s76
    %v78 = vld [vmem:[%s77] sm:$0x1]
    %s79 = sld [smem:[#allocation2 + $0x6]]
    %p80 = scmp.gt.s32.totalorder %s79, 0
    %s81 = scalar_select %p80, %s79, 0
    %p82 = scmp.lt.s32.totalorder %s81, 63
    %s83 = scalar_select %p82, %s81, 63
    %s84 = scalar_lea.vmem [#allocation6], %s83
    %v85 = vld [vmem:[%s84] sm:$0x1]
    %s86 = sld [smem:[#allocation2 + $0x7]]
    %p87 = scmp.gt.s32.totalorder %s86, 0
    %s88 = scalar_select %p87, %s86, 0
    %p89 = scmp.lt.s32.totalorder %s88, 63
    %s90 = scalar_select %p89, %s88, 63
    %s91 = scalar_lea.vmem [#allocation6], %s90
    %v92 = vld [vmem:[%s91] sm:$0x1]
    %v94 = vrot.slane %v50, 7
    %v97 = vrot.slane %v57, 6
    %v100 = vrot.slane %v64, 5
    %v103 = vrot.slane %v71, 4
    %v106 = vrot.slane %v78, 3
    %v109 = vrot.slane %v85, 2
    %v112 = vrot.slane %v92, 1
    %vm114 = vcmask 1040384
    %v115 = vsel %vm114, %v43, %v94
    %vm116 = vcmask 1041408
    %v117 = vsel %vm116, %v115, %v97
    %vm118 = vcmask 1042432
    %v119 = vsel %vm118, %v117, %v100
    %vm120 = vcmask 1043456
    %v121 = vsel %vm120, %v119, %v103
    %vm122 = vcmask 1044480
    %v123 = vsel %vm122, %v121, %v106
    %vm124 = vcmask 1045504
    %v125 = vsel %vm124, %v123, %v109
    %vm126 = vcmask 1046528
    %v127 = vsel %vm126, %v125, %v112
    %128 = vst [vmem:[#allocation7] sm:$0xff] %v127
    // Predicated region
    $region18: #{tpu_custom_call.1} parent=1 // pred_check
      _
    $region19: #{tpu_custom_call.1} parent=1 // pred_check_branch
      %130 = sbr.rel (0) target = $region21
    $region20: #{tpu_custom_call.1} parent=1 // pred_region
      %s132 = ssub.s32 128, 128
      %133 = vsyncadd [#allocation4], %s132
      %s135 = sshll.u32 [#allocation7], 4
      %s136 = int_to_ptr.vmem [resolvable:$true] %s135
      %138 = dma.vmem_to_hbm [thread:$0]  %s136, 128, %s2, [#allocation4]
    $region21: #{tpu_custom_call.1} parent=1 // pred_fallthru
      _
    // Predicated region
    $region22: #{tpu_custom_call.1} parent=1 // pred_check
      _
    $region23: #{tpu_custom_call.1} parent=1 // pred_check_branch
      %140 = sbr.rel (0) target = $region25
    $region24: #{tpu_custom_call.1} parent=1 // pred_region
      %141 = dma.done [#allocation4], 128
    $region25: #{tpu_custom_call.1} parent=1 // pred_fallthru
      _
    %142 = vsyncpa [#allocation3], 1
    %143 = vsyncpa [#allocation4], 1
    %144 = vsyncpa [#allocation5], 1

</llo_original>
